<compile_context>
chip_gen: v7x
topology: tpu7x:2x2x1
jax: 0.10.0
libtpu: 0.0.40
codegen_flags: <defaults>
</compile_context>

<pallas_src>
import jax
import jax.numpy as jnp
from jax.experimental import pallas as pl
from jax.experimental.pallas import tpu as pltpu

_LANES = 128
_SUBLANES = 8
_TILE_ELEMS = _LANES * _SUBLANES  # 1024 elements = one f32 vreg


def _relu_kernel(x_ref, o_ref):
    """Elementwise ReLU on the whole VMEM tile."""
    o_ref[...] = jnp.maximum(x_ref[...], 0).astype(o_ref.dtype)


def _tpu_vmem_bytes():
    """Physical per-core VMEM; conservative fallback if the query fails."""
    try:
        return int(pltpu.get_tpu_info().vmem_capacity_bytes)
    except Exception:  # e.g. interpret mode / unknown chip
        return 64 * 1024 * 1024  # v7x-sized (smallest current generation)


def relu_pallas(x, *, donate=False):
    """ReLU(x) via Pallas, preserving x's shape and dtype.

    donate=True adds input_output_aliases={0: 0} so the output reuses the
    input's HBM buffer (only safe if the caller no longer needs data[0]).
    """
    orig_shape = x.shape
    n = x.size
    if n == 0:
        return x

    dtype = x.dtype
    itemsize = jnp.dtype(dtype).itemsize

    # ---- generation-aware sizing (v5e/v6e: 128 MiB VMEM, v7x: 64 MiB) ----
    vmem_phys = _tpu_vmem_bytes()
    # Scoped-VMEM limit we request from the compiler: half physical, capped.
    vmem_limit = int(min(vmem_phys // 2, 96 * 1024 * 1024))
    # Tiled-path block target: ~vmem/16 so in+out double-buffered (4x block)
    # stays well inside vmem_limit.  v5e/v6e -> 8 MiB, v7x -> 4 MiB.
    block_bytes_target = int(min(8 * 1024 * 1024, vmem_phys // 16))
    # Grid-less path holds input + output resident simultaneously.
    single_block_max = int(min(16 * 1024 * 1024, vmem_limit // 4))

    # ---- lane-dense, sublane-full layout ----
    # Row-major flatten, pad to a multiple of 8*128, view as (rows, 128):
    # every store is a full-width unmasked vst and every vreg uses all 8
    # sublanes.  Padding (zeros) is ReLU-invariant and sliced off afterwards.
    flat = x.reshape(-1)
    pad = (-n) % _TILE_ELEMS
    if pad:
        flat = jnp.pad(flat, (0, pad))
    n_pad = n + pad
    R = n_pad // _LANES
    x2 = flat.reshape(R, _LANES)

    nbytes = n_pad * itemsize
    cost = pl.CostEstimate(flops=n_pad, transcendentals=0,
                           bytes_accessed=2 * nbytes)
    io_alias = {0: 0} if donate else {}

    if nbytes <= single_block_max:
        # Single invocation: no grid, no pipeline machinery, one DMA in/out.
        y2 = pl.pallas_call(
            _relu_kernel,
            out_shape=jax.ShapeDtypeStruct((R, _LANES), dtype),
            compiler_params=pltpu.CompilerParams(vmem_limit_bytes=vmem_limit),
            cost_estimate=cost,
            input_output_aliases=io_alias,
        )(x2)
    else:
        # Large inputs: row-tiled 1-D "parallel" grid (megacore sharding on
        # v7x), blocks sized per generation and rounded to sublane multiples.
        row_bytes = _LANES * itemsize
        bm = max(_SUBLANES,
                 (block_bytes_target // row_bytes) // _SUBLANES * _SUBLANES)
        bm = min(bm, R)
        # Keep >= ~8 grid steps for cross-TC balance, but never shrink a
        # block below ~1 MiB (per-step overhead would dominate again).
        min_bm = max(_SUBLANES,
                     ((1024 * 1024) // row_bytes) // _SUBLANES * _SUBLANES)
        while pl.cdiv(R, bm) < 8 and (bm // 2) >= min_bm:
            bm = (bm // 2) // _SUBLANES * _SUBLANES
        grid = (pl.cdiv(R, bm),)
        y2 = pl.pallas_call(
            _relu_kernel,
            out_shape=jax.ShapeDtypeStruct((R, _LANES), dtype),
            grid_spec=pltpu.PrefetchScalarGridSpec(
                num_scalar_prefetch=0,
                grid=grid,
                in_specs=[pl.BlockSpec((bm, _LANES), lambda i: (i, 0))],
                out_specs=pl.BlockSpec((bm, _LANES), lambda i: (i, 0)),
            ),
            compiler_params=pltpu.CompilerParams(
                dimension_semantics=("parallel",),
                vmem_limit_bytes=vmem_limit),
            cost_estimate=cost,
            input_output_aliases=io_alias,
        )(x2)

    y_flat = y2.reshape(-1)
    if pad:
        y_flat = y_flat[:n]
    return y_flat.reshape(orig_shape)


class ChemblLinearPallas:
    """JAX/Pallas analogue of the PyTorch ChemblLinear module.

    The reference __init__ constructs a lazy `exnn.Linear(out_channels)` that
    forward() never calls (so it never materializes weights); forward() is
    exactly ReLU on data[0] with data[1] passed through unchanged.
    """

    def __init__(self, out_channels):
        self.out_channels = out_channels
        # No parameters: the declared lazy Linear is never applied in the
        # reference forward(), hence no weights exist to translate.

    def __call__(self, data):
        x, aux = data[0], data[1]
        # donate=False: the caller (and the test below) may still read x.
        y = relu_pallas(x, donate=False)
        return (y, aux)


if __name__ == "__main__":
    key = jax.random.PRNGKey(0)
    kx, ka, ko = jax.random.split(key, 3)

    B, C, H, W = 2, 4, 16, 16          # data[0]: (2, 4, 16, 16)
    out_channels = 32                  # declared but unused by forward()

    x = jax.random.normal(kx, (B, C, H, W), jnp.float32)
    aux = jax.random.normal(ka, (B, 8), jnp.float32)   # data[1], passthrough

    module = ChemblLinearPallas(out_channels)

    y, aux_out = module((x, aux))
    jax.block_until_ready(y)
    jax.block_until_ready(aux_out)

    # Reference check in plain JAX: forward() == ReLU(data[0]).
    y_ref = jnp.maximum(x, 0.0)
    assert y.shape == x.shape
    assert y.dtype == x.dtype
    assert jnp.array_equal(y, y_ref)
    assert jnp.array_equal(aux_out, aux)

    # Extra coverage: size not a multiple of 128 exercises the pad/slice path.
    x_odd = jax.random.normal(ko, (3, 5, 7), jnp.float32)
    y_odd, _ = module((x_odd, aux))
    jax.block_until_ready(y_odd)
    assert y_odd.shape == x_odd.shape
    assert jnp.array_equal(y_odd, jnp.maximum(x_odd, 0.0))

    print("KERNEL_OK")
</pallas_src>

<mosaic_0001>
module attributes {stable_mosaic.version = 11 : i64} {
  func.func @_relu_kernel(%arg0: memref<16x128xf32, #tpu.memory_space<vmem>>, %arg1: memref<16x128xf32, #tpu.memory_space<vmem>>) attributes {dimension_semantics = [], scalar_prefetch = 0 : i64, scratch_operands = 0 : i64, tpu.core_type = #tpu.core_type<tc>} {
    %c0 = arith.constant 0 : index
    %c0_0 = arith.constant 0 : index
    %0 = vector.load %arg0[%c0, %c0_0] : memref<16x128xf32, #tpu.memory_space<vmem>>, vector<16x128xf32>
    %cst = arith.constant 0.000000e+00 : f32
    %1 = vector.broadcast %cst : f32 to vector<16x128xf32>
    %2 = arith.maximumf %0, %1 : vector<16x128xf32>
    %c0_1 = arith.constant 0 : index
    %c0_2 = arith.constant 0 : index
    %3 = vector.load %arg1[%c0_1, %c0_2] : memref<16x128xf32, #tpu.memory_space<vmem>>, vector<16x128xf32>
    tpu.vector_store %arg1[%c0_1, %c0_2], %2 {strides = array<i32>} : memref<16x128xf32, #tpu.memory_space<vmem>>, vector<16x128xf32>,
    return
  }
}

</mosaic_0001>

<llo_original>
// kernel: tpu_custom_call.1
$region0: #{tpu_custom_call.1}
  #allocation0 [shape = 'u32[]', space=smem, size = 0x4, offset = 0x4, fixed_abs, tag = 'smem constant byte address 0x4 - core index']
  #allocation1 [shape = 'u32[144,128]{1,0:T(1,128)}', space=vmem, size = 0x12000, scoped, tag = 'internal scratch']
  %s0 = inlined_call_operand.hbm [shape: f32[16,128], index: 0, kind: input, shape index: {}]
  %s1 = inlined_call_operand.hbm [shape: f32[16,128], index: 1, kind: output, shape index: {}]
  %s2 = sld [smem:[#allocation0]]
  $region18: #{tpu_custom_call.1} parent=0
    _
  %s4 = ssub.s32 1, %s2
  %s5 = scalar_select 0, %s4, %s2
  $region1: #{tpu_custom_call.1} parent=0
    #allocation2 [shape = 'u8[8192]{0}', space=vmem, size = 0x2000, scoped, tag = 'input window, operand 0, single buffered']
    #allocation3 [shape = 's32[1]{0}', space=sflag, size = 0x4, scoped, tag = 'scoped memory for tpu_custom_call.1']
    #allocation4 [shape = 's32[1]{0}', space=sflag, size = 0x4, scoped, tag = 'scoped memory for tpu_custom_call.1']
    #allocation5 [shape = 'u8[8192]{0}', space=vmem, size = 0x2000, scoped, tag = 'output window, operand 0, single buffered']
    %6 = vsyncpa [#allocation3], 0
    %7 = vsyncpa [#allocation4], 0
    // Predicated region
    $region2: #{tpu_custom_call.1} parent=1 // pred_check
      _
    $region3: #{tpu_custom_call.1} parent=1 // pred_check_branch
      %9 = sbr.rel (0) target = $region5
    $region4: #{tpu_custom_call.1} parent=1 // pred_region
      %s11 = ssub.s32 256, 256
      %12 = vsyncadd [#allocation3], %s11
      %s13 = sshll.u32 [#allocation2], 4
      %s14 = int_to_ptr.vmem [resolvable:$true] %s13
      %19 = dma.hbm_to_vmem [thread:$0]  %s0, 256, %s14, [#allocation3], 128, 128, 8
    $region5: #{tpu_custom_call.1} parent=1 // pred_fallthru
      _
    // Predicated region
    $region6: #{tpu_custom_call.1} parent=1 // pred_check
      _
    $region7: #{tpu_custom_call.1} parent=1 // pred_check_branch
      %21 = sbr.rel (0) target = $region9
    $region8: #{tpu_custom_call.1} parent=1 // pred_region
      %22 = dma.done [#allocation3], 256
    $region9: #{tpu_custom_call.1} parent=1 // pred_fallthru
      _
    %v23 = vld [vmem:[#allocation2] sm:$0xff]
    %v24 = vld [vmem:[#allocation2 + $0x8] sm:$0xff]
    %v25 = vmax.f32 %v23, 0.0
    %v26 = vmax.f32 %v24, 0.0
    %27 = vst [vmem:[#allocation5] sm:$0xff] %v25
    %28 = vst [vmem:[#allocation5 + $0x8] sm:$0xff] %v26
    // Predicated region
    $region10: #{tpu_custom_call.1} parent=1 // pred_check
      _
    $region11: #{tpu_custom_call.1} parent=1 // pred_check_branch
      %30 = sbr.rel (0) target = $region13
    $region12: #{tpu_custom_call.1} parent=1 // pred_region
      %s32 = ssub.s32 256, 256
      %33 = vsyncadd [#allocation4], %s32
      %s34 = sshll.u32 [#allocation5], 4
      %s35 = int_to_ptr.vmem [resolvable:$true] %s34
      %40 = dma.vmem_to_hbm [thread:$0]  %s35, 256, %s1, [#allocation4], 128, 128, 8
    $region13: #{tpu_custom_call.1} parent=1 // pred_fallthru
      _
    // Predicated region
    $region14: #{tpu_custom_call.1} parent=1 // pred_check
      _
    $region15: #{tpu_custom_call.1} parent=1 // pred_check_branch
      %42 = sbr.rel (0) target = $region17
    $region16: #{tpu_custom_call.1} parent=1 // pred_region
      %43 = dma.done [#allocation4], 256
    $region17: #{tpu_custom_call.1} parent=1 // pred_fallthru
      _
    %44 = vsyncpa [#allocation3], 1
    %45 = vsyncpa [#allocation4], 1

</llo_original>
